<compile_context>
chip_gen: v7x
topology: tpu7x:2x2x1
jax: 0.10.0
libtpu: 0.0.40
codegen_flags: <defaults>
</compile_context>

<pallas_src>
import functools
import math

import jax
import jax.numpy as jnp
from jax.experimental import pallas as pl
from jax.experimental.pallas import tpu as pltpu

_LANE = 128
_SUBLANE = 8
_LN_EPS = 1e-5
_MAX_BATCH_TILE = 512   # rows per grid step (multiple of 8); conservative vs v7x 64 MiB VMEM


def _round_up(x, m):
    return (x + m - 1) // m * m


# ----------------------------- Fused Pallas kernel -----------------------------

def _fused_actor_kernel(*refs, n_hidden, hidden_real_dims, deterministic):
    """[Linear -> ELU -> LayerNorm] * n_hidden -> Linear (-> mu + std * noise).

    ref order: x, (W, b, gamma, beta) * n_hidden, W_last, b_last,
               [std, noise]  (only if not deterministic), out.

    All feature dims are zero-padded to multiples of 128. Padded columns of
    W / b / gamma / beta are zero, so padded activation columns are exactly 0
    through every layer; LayerNorm sums over the padded tile but divides by the
    REAL width, giving identical statistics to the unpadded computation.
    """
    out_ref = refs[-1]
    x = refs[0][...]                                         # [Bt, D0_pad] f32
    idx = 1
    for l in range(n_hidden):
        w = refs[idx][...]                                   # [Din_pad, Dout_pad]
        b = refs[idx + 1][...]                               # [1, Dout_pad]
        g = refs[idx + 2][...]
        beta = refs[idx + 3][...]
        idx += 4
        h = jnp.dot(x, w, preferred_element_type=jnp.float32) + b
        # ELU (alpha = 1.0, PyTorch default).
        # TODO(synk): jnp.expm1 would be bit-closer to torch's ELU for tiny |h|;
        #             exp(min(h,0)) - 1 is used to keep the Mosaic lowering simple.
        a = jnp.where(h > 0, h, jnp.exp(jnp.minimum(h, 0.0)) - 1.0)
        # Single-pass LayerNorm stats over the REAL width (padded cols are 0).
        inv_n = 1.0 / float(hidden_real_dims[l])
        mean = jnp.sum(a, axis=-1, keepdims=True) * inv_n
        var = jnp.sum(a * a, axis=-1, keepdims=True) * inv_n - mean * mean
        # gamma/beta are zero in padded columns -> padded output columns stay 0.
        x = (a - mean) * jax.lax.rsqrt(var + _LN_EPS) * g + beta
    w_last = refs[idx][...]
    b_last = refs[idx + 1][...]
    mu = jnp.dot(x, w_last, preferred_element_type=jnp.float32) + b_last
    if deterministic:
        out_ref[...] = mu
    else:
        std = refs[idx + 2][...]                             # [1, A_pad], precomputed
        noise = refs[idx + 3][...]                           # [Bt, A_pad]
        out_ref[...] = mu + std * noise


# ----------------------------- Jitted wrapper -----------------------------

@functools.partial(
    jax.jit,
    static_argnames=("hidden_real", "action_dim", "min_logstd", "deterministic"))
def _actor_forward(params, obs, noise, *, hidden_real, action_dim, min_logstd,
                   deterministic):
    hidden_params, (w_last, b_last), logstd_p = params
    B, obs_dim = obs.shape
    din_pad = hidden_params[0][0].shape[0] if hidden_params else w_last.shape[0]
    a_pad = w_last.shape[1]

    # Batch tiling: multiple of 8 sublanes, capped tile size, 1-D grid over batch.
    b_pad8 = _round_up(max(B, _SUBLANE), _SUBLANE)
    b_tile = min(b_pad8, _MAX_BATCH_TILE)
    b_pad = _round_up(b_pad8, b_tile)

    obs_p = jnp.zeros((b_pad, din_pad), jnp.float32).at[:B, :obs_dim].set(obs)

    const = lambda i: (0, 0)                      # weights stay resident across batch tiles
    inputs = [obs_p]
    in_specs = [pl.BlockSpec((b_tile, din_pad), lambda i: (i, 0))]
    for (W, b, g, beta) in hidden_params:
        inputs += [W, b, g, beta]
        in_specs += [pl.BlockSpec(W.shape, const),
                     pl.BlockSpec(b.shape, const),
                     pl.BlockSpec(g.shape, const),
                     pl.BlockSpec(beta.shape, const)]
    inputs += [w_last, b_last]
    in_specs += [pl.BlockSpec(w_last.shape, const),
                 pl.BlockSpec(b_last.shape, const)]
    if not deterministic:
        # clamp_std() + exp hoisted out of the kernel (parameter-only work).
        std = jnp.exp(jnp.maximum(logstd_p, min_logstd))
        noise_p = jnp.zeros((b_pad, a_pad), jnp.float32).at[:B, :action_dim].set(noise)
        inputs += [std, noise_p]
        in_specs += [pl.BlockSpec(std.shape, const),
                     pl.BlockSpec((b_tile, a_pad), lambda i: (i, 0))]

    kernel = functools.partial(
        _fused_actor_kernel,
        n_hidden=len(hidden_params),
        hidden_real_dims=hidden_real,
        deterministic=deterministic)

    out = pl.pallas_call(
        kernel,
        out_shape=jax.ShapeDtypeStruct((b_pad, a_pad), jnp.float32),
        grid=(b_pad // b_tile,),
        in_specs=in_specs,
        out_specs=pl.BlockSpec((b_tile, a_pad), lambda i: (i, 0)),
        compiler_params=pltpu.CompilerParams(dimension_semantics=("parallel",)),
    )(*inputs)
    return out[:B, :action_dim]


# ----------------------------- Model wrapper -----------------------------

class ActorStochasticMLPPallas:
    """Pallas/TPU port of ActorStochasticMLP (forward pass only)."""

    def __init__(self, obs_dim, action_dim, units,
                 init_gain=1.0, init_logstd=-1.0, min_logstd=-10.0, key=None):
        self.obs_dim = int(obs_dim)
        self.action_dim = int(action_dim)
        self.min_logstd = float(min_logstd)
        self.layer_dims = [obs_dim] + list(units) + [action_dim]
        self.hidden_real = tuple(int(u) for u in units)

        if key is None:
            key = jax.random.PRNGKey(0)

        padded = [_round_up(d, _LANE) for d in self.layer_dims]
        hidden_params = []
        final_params = None
        for i in range(len(self.layer_dims) - 1):
            din, dout = self.layer_dims[i], self.layer_dims[i + 1]
            dinp, doutp = padded[i], padded[i + 1]
            key, kw, kb = jax.random.split(key, 3)
            bound = 1.0 / math.sqrt(din)                  # PyTorch nn.Linear default init
            W = jax.random.uniform(kw, (din, dout), jnp.float32, -bound, bound) * init_gain
            b = jax.random.uniform(kb, (1, dout), jnp.float32, -bound, bound) * init_gain
            Wp = jnp.zeros((dinp, doutp), jnp.float32).at[:din, :dout].set(W)
            bp = jnp.zeros((1, doutp), jnp.float32).at[:, :dout].set(b)
            if i < len(self.layer_dims) - 2:
                # LayerNorm affine: weight = 1 * init_gain, bias = 0 * init_gain.
                gp = jnp.zeros((1, doutp), jnp.float32).at[:, :dout].set(float(init_gain))
                betap = jnp.zeros((1, doutp), jnp.float32)
                hidden_params.append((Wp, bp, gp, betap))
            else:
                final_params = (Wp, bp)
        logstd_p = jnp.zeros((1, padded[-1]), jnp.float32).at[:, :action_dim].set(
            float(init_logstd) * float(init_gain))
        self.params = (tuple(hidden_params), final_params, logstd_p)

    def forward(self, obs, noise=None, deterministic=False):
        obs = jnp.asarray(obs, jnp.float32)
        if noise is None:
            noise = jnp.zeros((obs.shape[0], self.action_dim), jnp.float32)
        return _actor_forward(self.params, obs, jnp.asarray(noise, jnp.float32),
                              hidden_real=self.hidden_real,
                              action_dim=self.action_dim,
                              min_logstd=self.min_logstd,
                              deterministic=bool(deterministic))


# ----------------------------- Pure-JAX reference -----------------------------

def _reference_forward(model, obs, noise, deterministic):
    dims = model.layer_dims
    hidden_params, (w_last, b_last), logstd_p = model.params
    x = jnp.asarray(obs, jnp.float32)
    for l, (W, b, g, beta) in enumerate(hidden_params):
        din, dout = dims[l], dims[l + 1]
        h = x @ W[:din, :dout] + b[:, :dout]
        a = jnp.where(h > 0, h, jnp.expm1(h))
        mean = jnp.mean(a, axis=-1, keepdims=True)
        var = jnp.mean((a - mean) ** 2, axis=-1, keepdims=True)
        x = (a - mean) / jnp.sqrt(var + _LN_EPS) * g[:, :dout] + beta[:, :dout]
    din, dout = dims[-2], dims[-1]
    mu = x @ w_last[:din, :dout] + b_last[:, :dout]
    if deterministic:
        return mu
    std = jnp.exp(jnp.maximum(logstd_p[:, :dout], model.min_logstd))
    return mu + std * noise


# ----------------------------- Demo / smoke test -----------------------------

if __name__ == "__main__":
    obs_dim = 32
    action_dim = 8
    units = [64, 64]
    batch = 8

    key = jax.random.PRNGKey(0)
    k_model, k_obs, k_noise = jax.random.split(key, 3)

    model = ActorStochasticMLPPallas(obs_dim, action_dim, units, key=k_model)

    obs = jax.random.normal(k_obs, (batch, obs_dim), jnp.float32)
    noise = jax.random.normal(k_noise, (batch, action_dim), jnp.float32)

    sample = model.forward(obs, noise, deterministic=False)
    mu = model.forward(obs, noise, deterministic=True)
    jax.block_until_ready((sample, mu))

    ref_sample = _reference_forward(model, obs, noise, deterministic=False)
    ref_mu = _reference_forward(model, obs, noise, deterministic=True)

    assert sample.shape == (batch, action_dim)
    assert mu.shape == (batch, action_dim)
    assert bool(jnp.all(jnp.isfinite(sample)))
    assert bool(jnp.all(jnp.isfinite(mu)))
    assert bool(jnp.allclose(sample, ref_sample, atol=2e-3, rtol=2e-3))
    assert bool(jnp.allclose(mu, ref_mu, atol=2e-3, rtol=2e-3))

    print("KERNEL_OK")
</pallas_src>

<mosaic_0001>
module attributes {stable_mosaic.version = 11 : i64} {
  func.func @_fused_actor_kernel(%arg0: i32, %arg1: memref<8x128xf32, #tpu.memory_space<vmem>>, %arg2: memref<128x128xf32, #tpu.memory_space<vmem>>, %arg3: memref<1x128xf32, #tpu.memory_space<vmem>>, %arg4: memref<1x128xf32, #tpu.memory_space<vmem>>, %arg5: memref<1x128xf32, #tpu.memory_space<vmem>>, %arg6: memref<128x128xf32, #tpu.memory_space<vmem>>, %arg7: memref<1x128xf32, #tpu.memory_space<vmem>>, %arg8: memref<1x128xf32, #tpu.memory_space<vmem>>, %arg9: memref<1x128xf32, #tpu.memory_space<vmem>>, %arg10: memref<128x128xf32, #tpu.memory_space<vmem>>, %arg11: memref<1x128xf32, #tpu.memory_space<vmem>>, %arg12: memref<1x128xf32, #tpu.memory_space<vmem>>, %arg13: memref<8x128xf32, #tpu.memory_space<vmem>>, %arg14: memref<8x128xf32, #tpu.memory_space<vmem>>) attributes {dimension_semantics = [#tpu.dimension_semantics<parallel>], iteration_bounds = array<i64: 1>, scalar_prefetch = 0 : i64, scratch_operands = 0 : i64, tpu.core_type = #tpu.core_type<tc>, window_params = [{transform_indices = @transform_0, window_bounds = array<i64: 8, 128>}, {pipeline_mode = #tpu.pipeline_mode<synchronous>, transform_indices = @transform_1, window_bounds = array<i64: 128, 128>}, {pipeline_mode = #tpu.pipeline_mode<synchronous>, transform_indices = @transform_2, window_bounds = array<i64: 1, 128>}, {pipeline_mode = #tpu.pipeline_mode<synchronous>, transform_indices = @transform_3, window_bounds = array<i64: 1, 128>}, {pipeline_mode = #tpu.pipeline_mode<synchronous>, transform_indices = @transform_4, window_bounds = array<i64: 1, 128>}, {pipeline_mode = #tpu.pipeline_mode<synchronous>, transform_indices = @transform_5, window_bounds = array<i64: 128, 128>}, {pipeline_mode = #tpu.pipeline_mode<synchronous>, transform_indices = @transform_6, window_bounds = array<i64: 1, 128>}, {pipeline_mode = #tpu.pipeline_mode<synchronous>, transform_indices = @transform_7, window_bounds = array<i64: 1, 128>}, {pipeline_mode = #tpu.pipeline_mode<synchronous>, transform_indices = @transform_8, window_bounds = array<i64: 1, 128>}, {pipeline_mode = #tpu.pipeline_mode<synchronous>, transform_indices = @transform_9, window_bounds = array<i64: 128, 128>}, {pipeline_mode = #tpu.pipeline_mode<synchronous>, transform_indices = @transform_10, window_bounds = array<i64: 1, 128>}, {pipeline_mode = #tpu.pipeline_mode<synchronous>, transform_indices = @transform_11, window_bounds = array<i64: 1, 128>}, {transform_indices = @transform_12, window_bounds = array<i64: 8, 128>}, {transform_indices = @transform_13, window_bounds = array<i64: 8, 128>}]} {
    %c0 = arith.constant 0 : index
    %c0_0 = arith.constant 0 : index
    %0 = vector.load %arg1[%c0, %c0_0] : memref<8x128xf32, #tpu.memory_space<vmem>>, vector<8x128xf32>
    %c0_1 = arith.constant 0 : index
    %c0_2 = arith.constant 0 : index
    %1 = vector.load %arg2[%c0_1, %c0_2] : memref<128x128xf32, #tpu.memory_space<vmem>>, vector<128x128xf32>
    %c0_3 = arith.constant 0 : index
    %c0_4 = arith.constant 0 : index
    %2 = vector.load %arg3[%c0_3, %c0_4] : memref<1x128xf32, #tpu.memory_space<vmem>>, vector<1x128xf32>
    %c0_5 = arith.constant 0 : index
    %c0_6 = arith.constant 0 : index
    %3 = vector.load %arg4[%c0_5, %c0_6] : memref<1x128xf32, #tpu.memory_space<vmem>>, vector<1x128xf32>
    %c0_7 = arith.constant 0 : index
    %c0_8 = arith.constant 0 : index
    %4 = vector.load %arg5[%c0_7, %c0_8] : memref<1x128xf32, #tpu.memory_space<vmem>>, vector<1x128xf32>
    %cst = arith.constant dense<0.000000e+00> : vector<8x128xf32>
    %5 = tpu.matmul %0, %1, %cst {dimension_numbers = #tpu.dot_dimension_numbers<[1], [0], [0], [1], [0, 0, 1, 1], [], []>} : vector<8x128xf32>, vector<128x128xf32>, vector<8x128xf32> -> vector<8x128xf32>
    %6 = vector.broadcast %2 : vector<1x128xf32> to vector<8x128xf32>
    %7 = arith.addf %5, %6 : vector<8x128xf32>
    %cst_9 = arith.constant 0.000000e+00 : f32
    %8 = vector.broadcast %cst_9 : f32 to vector<8x128xf32>
    %9 = arith.cmpf ogt, %7, %8 : vector<8x128xf32>
    %cst_10 = arith.constant 0.000000e+00 : f32
    %10 = vector.broadcast %cst_10 : f32 to vector<8x128xf32>
    %11 = arith.minimumf %7, %10 : vector<8x128xf32>
    %12 = math.exp %11 : vector<8x128xf32>
    %cst_11 = arith.constant 1.000000e+00 : f32
    %13 = vector.broadcast %cst_11 : f32 to vector<8x128xf32>
    %14 = arith.subf %12, %13 : vector<8x128xf32>
    %15 = arith.select %9, %7, %14 : vector<8x128xi1>, vector<8x128xf32>
    %cst_12 = arith.constant dense<0.000000e+00> : vector<8xf32>
    %16 = vector.multi_reduction <add>, %15, %cst_12 [1] : vector<8x128xf32> to vector<8xf32>
    %17 = vector.shape_cast %16 : vector<8xf32> to vector<8x1xf32>
    %cst_13 = arith.constant 1.562500e-02 : f32
    %18 = vector.broadcast %cst_13 : f32 to vector<8x1xf32>
    %19 = arith.mulf %17, %18 : vector<8x1xf32>
    %20 = arith.mulf %15, %15 : vector<8x128xf32>
    %cst_14 = arith.constant dense<0.000000e+00> : vector<8xf32>
    %21 = vector.multi_reduction <add>, %20, %cst_14 [1] : vector<8x128xf32> to vector<8xf32>
    %22 = vector.shape_cast %21 : vector<8xf32> to vector<8x1xf32>
    %cst_15 = arith.constant 1.562500e-02 : f32
    %23 = vector.broadcast %cst_15 : f32 to vector<8x1xf32>
    %24 = arith.mulf %22, %23 : vector<8x1xf32>
    %25 = arith.mulf %19, %19 : vector<8x1xf32>
    %26 = arith.subf %24, %25 : vector<8x1xf32>
    %27 = vector.broadcast %19 : vector<8x1xf32> to vector<8x128xf32>
    %28 = arith.subf %15, %27 : vector<8x128xf32>
    %cst_16 = arith.constant 9.99999974E-6 : f32
    %29 = vector.broadcast %cst_16 : f32 to vector<8x1xf32>
    %30 = arith.addf %26, %29 : vector<8x1xf32>
    %31 = math.rsqrt %30 : vector<8x1xf32>
    %32 = vector.broadcast %31 : vector<8x1xf32> to vector<8x128xf32>
    %33 = arith.mulf %28, %32 : vector<8x128xf32>
    %34 = vector.broadcast %3 : vector<1x128xf32> to vector<8x128xf32>
    %35 = arith.mulf %33, %34 : vector<8x128xf32>
    %36 = vector.broadcast %4 : vector<1x128xf32> to vector<8x128xf32>
    %37 = arith.addf %35, %36 : vector<8x128xf32>
    %c0_17 = arith.constant 0 : index
    %c0_18 = arith.constant 0 : index
    %38 = vector.load %arg6[%c0_17, %c0_18] : memref<128x128xf32, #tpu.memory_space<vmem>>, vector<128x128xf32>
    %c0_19 = arith.constant 0 : index
    %c0_20 = arith.constant 0 : index
    %39 = vector.load %arg7[%c0_19, %c0_20] : memref<1x128xf32, #tpu.memory_space<vmem>>, vector<1x128xf32>
    %c0_21 = arith.constant 0 : index
    %c0_22 = arith.constant 0 : index
    %40 = vector.load %arg8[%c0_21, %c0_22] : memref<1x128xf32, #tpu.memory_space<vmem>>, vector<1x128xf32>
    %c0_23 = arith.constant 0 : index
    %c0_24 = arith.constant 0 : index
    %41 = vector.load %arg9[%c0_23, %c0_24] : memref<1x128xf32, #tpu.memory_space<vmem>>, vector<1x128xf32>
    %cst_25 = arith.constant dense<0.000000e+00> : vector<8x128xf32>
    %42 = tpu.matmul %37, %38, %cst_25 {dimension_numbers = #tpu.dot_dimension_numbers<[1], [0], [0], [1], [0, 0, 1, 1], [], []>} : vector<8x128xf32>, vector<128x128xf32>, vector<8x128xf32> -> vector<8x128xf32>
    %43 = vector.broadcast %39 : vector<1x128xf32> to vector<8x128xf32>
    %44 = arith.addf %42, %43 : vector<8x128xf32>
    %cst_26 = arith.constant 0.000000e+00 : f32
    %45 = vector.broadcast %cst_26 : f32 to vector<8x128xf32>
    %46 = arith.cmpf ogt, %44, %45 : vector<8x128xf32>
    %cst_27 = arith.constant 0.000000e+00 : f32
    %47 = vector.broadcast %cst_27 : f32 to vector<8x128xf32>
    %48 = arith.minimumf %44, %47 : vector<8x128xf32>
    %49 = math.exp %48 : vector<8x128xf32>
    %cst_28 = arith.constant 1.000000e+00 : f32
    %50 = vector.broadcast %cst_28 : f32 to vector<8x128xf32>
    %51 = arith.subf %49, %50 : vector<8x128xf32>
    %52 = arith.select %46, %44, %51 : vector<8x128xi1>, vector<8x128xf32>
    %cst_29 = arith.constant dense<0.000000e+00> : vector<8xf32>
    %53 = vector.multi_reduction <add>, %52, %cst_29 [1] : vector<8x128xf32> to vector<8xf32>
    %54 = vector.shape_cast %53 : vector<8xf32> to vector<8x1xf32>
    %cst_30 = arith.constant 1.562500e-02 : f32
    %55 = vector.broadcast %cst_30 : f32 to vector<8x1xf32>
    %56 = arith.mulf %54, %55 : vector<8x1xf32>
    %57 = arith.mulf %52, %52 : vector<8x128xf32>
    %cst_31 = arith.constant dense<0.000000e+00> : vector<8xf32>
    %58 = vector.multi_reduction <add>, %57, %cst_31 [1] : vector<8x128xf32> to vector<8xf32>
    %59 = vector.shape_cast %58 : vector<8xf32> to vector<8x1xf32>
    %cst_32 = arith.constant 1.562500e-02 : f32
    %60 = vector.broadcast %cst_32 : f32 to vector<8x1xf32>
    %61 = arith.mulf %59, %60 : vector<8x1xf32>
    %62 = arith.mulf %56, %56 : vector<8x1xf32>
    %63 = arith.subf %61, %62 : vector<8x1xf32>
    %64 = vector.broadcast %56 : vector<8x1xf32> to vector<8x128xf32>
    %65 = arith.subf %52, %64 : vector<8x128xf32>
    %cst_33 = arith.constant 9.99999974E-6 : f32
    %66 = vector.broadcast %cst_33 : f32 to vector<8x1xf32>
    %67 = arith.addf %63, %66 : vector<8x1xf32>
    %68 = math.rsqrt %67 : vector<8x1xf32>
    %69 = vector.broadcast %68 : vector<8x1xf32> to vector<8x128xf32>
    %70 = arith.mulf %65, %69 : vector<8x128xf32>
    %71 = vector.broadcast %40 : vector<1x128xf32> to vector<8x128xf32>
    %72 = arith.mulf %70, %71 : vector<8x128xf32>
    %73 = vector.broadcast %41 : vector<1x128xf32> to vector<8x128xf32>
    %74 = arith.addf %72, %73 : vector<8x128xf32>
    %c0_34 = arith.constant 0 : index
    %c0_35 = arith.constant 0 : index
    %75 = vector.load %arg10[%c0_34, %c0_35] : memref<128x128xf32, #tpu.memory_space<vmem>>, vector<128x128xf32>
    %c0_36 = arith.constant 0 : index
    %c0_37 = arith.constant 0 : index
    %76 = vector.load %arg11[%c0_36, %c0_37] : memref<1x128xf32, #tpu.memory_space<vmem>>, vector<1x128xf32>
    %cst_38 = arith.constant dense<0.000000e+00> : vector<8x128xf32>
    %77 = tpu.matmul %74, %75, %cst_38 {dimension_numbers = #tpu.dot_dimension_numbers<[1], [0], [0], [1], [0, 0, 1, 1], [], []>} : vector<8x128xf32>, vector<128x128xf32>, vector<8x128xf32> -> vector<8x128xf32>
    %78 = vector.broadcast %76 : vector<1x128xf32> to vector<8x128xf32>
    %79 = arith.addf %77, %78 : vector<8x128xf32>
    %c0_39 = arith.constant 0 : index
    %c0_40 = arith.constant 0 : index
    %80 = vector.load %arg12[%c0_39, %c0_40] : memref<1x128xf32, #tpu.memory_space<vmem>>, vector<1x128xf32>
    %c0_41 = arith.constant 0 : index
    %c0_42 = arith.constant 0 : index
    %81 = vector.load %arg13[%c0_41, %c0_42] : memref<8x128xf32, #tpu.memory_space<vmem>>, vector<8x128xf32>
    %82 = vector.broadcast %80 : vector<1x128xf32> to vector<8x128xf32>
    %83 = arith.mulf %82, %81 : vector<8x128xf32>
    %84 = arith.addf %79, %83 : vector<8x128xf32>
    %c0_43 = arith.constant 0 : index
    %c0_44 = arith.constant 0 : index
    %85 = vector.load %arg14[%c0_43, %c0_44] : memref<8x128xf32, #tpu.memory_space<vmem>>, vector<8x128xf32>
    tpu.vector_store %arg14[%c0_43, %c0_44], %84 {strides = array<i32>} : memref<8x128xf32, #tpu.memory_space<vmem>>, vector<8x128xf32>,
    return
  }
  func.func @transform_0(%arg0: i32) -> (i32, i32) {
    %c0_i32 = arith.constant 0 : i32
    %c0_i32_0 = arith.constant 0 : i32
    return %arg0, %c0_i32 : i32, i32
  }
  func.func @transform_1(%arg0: i32) -> (i32, i32) {
    %c0_i32 = arith.constant 0 : i32
    %c0_i32_0 = arith.constant 0 : i32
    %c0_i32_1 = arith.constant 0 : i32
    return %c0_i32, %c0_i32_0 : i32, i32
  }
  func.func @transform_2(%arg0: i32) -> (i32, i32) {
    %c0_i32 = arith.constant 0 : i32
    %c0_i32_0 = arith.constant 0 : i32
    %c0_i32_1 = arith.constant 0 : i32
    return %c0_i32, %c0_i32_0 : i32, i32
  }
  func.func @transform_3(%arg0: i32) -> (i32, i32) {
    %c0_i32 = arith.constant 0 : i32
    %c0_i32_0 = arith.constant 0 : i32
    %c0_i32_1 = arith.constant 0 : i32
    return %c0_i32, %c0_i32_0 : i32, i32
  }
  func.func @transform_4(%arg0: i32) -> (i32, i32) {
    %c0_i32 = arith.constant 0 : i32
    %c0_i32_0 = arith.constant 0 : i32
    %c0_i32_1 = arith.constant 0 : i32
    return %c0_i32, %c0_i32_0 : i32, i32
  }
  func.func @transform_5(%arg0: i32) -> (i32, i32) {
    %c0_i32 = arith.constant 0 : i32
    %c0_i32_0 = arith.constant 0 : i32
    %c0_i32_1 = arith.constant 0 : i32
    return %c0_i32, %c0_i32_0 : i32, i32
  }
  func.func @transform_6(%arg0: i32) -> (i32, i32) {
    %c0_i32 = arith.constant 0 : i32
    %c0_i32_0 = arith.constant 0 : i32
    %c0_i32_1 = arith.constant 0 : i32
    return %c0_i32, %c0_i32_0 : i32, i32
  }
  func.func @transform_7(%arg0: i32) -> (i32, i32) {
    %c0_i32 = arith.constant 0 : i32
    %c0_i32_0 = arith.constant 0 : i32
    %c0_i32_1 = arith.constant 0 : i32
    return %c0_i32, %c0_i32_0 : i32, i32
  }
  func.func @transform_8(%arg0: i32) -> (i32, i32) {
    %c0_i32 = arith.constant 0 : i32
    %c0_i32_0 = arith.constant 0 : i32
    %c0_i32_1 = arith.constant 0 : i32
    return %c0_i32, %c0_i32_0 : i32, i32
  }
  func.func @transform_9(%arg0: i32) -> (i32, i32) {
    %c0_i32 = arith.constant 0 : i32
    %c0_i32_0 = arith.constant 0 : i32
    %c0_i32_1 = arith.constant 0 : i32
    return %c0_i32, %c0_i32_0 : i32, i32
  }
  func.func @transform_10(%arg0: i32) -> (i32, i32) {
    %c0_i32 = arith.constant 0 : i32
    %c0_i32_0 = arith.constant 0 : i32
    %c0_i32_1 = arith.constant 0 : i32
    return %c0_i32, %c0_i32_0 : i32, i32
  }
  func.func @transform_11(%arg0: i32) -> (i32, i32) {
    %c0_i32 = arith.constant 0 : i32
    %c0_i32_0 = arith.constant 0 : i32
    %c0_i32_1 = arith.constant 0 : i32
    return %c0_i32, %c0_i32_0 : i32, i32
  }
  func.func @transform_12(%arg0: i32) -> (i32, i32) {
    %c0_i32 = arith.constant 0 : i32
    %c0_i32_0 = arith.constant 0 : i32
    return %arg0, %c0_i32 : i32, i32
  }
  func.func @transform_13(%arg0: i32) -> (i32, i32) {
    %c0_i32 = arith.constant 0 : i32
    %c0_i32_0 = arith.constant 0 : i32
    return %arg0, %c0_i32 : i32, i32
  }
}

</mosaic_0001>

<llo_original>
// kernel: _actor_forward.1
$region0: #{_actor_forward.1}
  #allocation0 [shape = 'u32[]', space=smem, size = 0x4, offset = 0x4, fixed_abs, tag = 'smem constant byte address 0x4 - core index']
  #allocation1 [shape = 'u32[144,128]{1,0:T(1,128)}', space=vmem, size = 0x12000, scoped, tag = 'internal scratch']
  %s0 = inlined_call_operand.vmem [shape: f32[8,128], index: 0, kind: input, shape index: {}]
  %s1 = inlined_call_operand.hbm [shape: f32[128,128], index: 1, kind: input, shape index: {}]
  %s2 = inlined_call_operand.vmem [shape: f32[1,128], index: 2, kind: input, shape index: {}]
  %s3 = inlined_call_operand.vmem [shape: f32[1,128], index: 3, kind: input, shape index: {}]
  %s4 = inlined_call_operand.vmem [shape: f32[1,128], index: 4, kind: input, shape index: {}]
  %s5 = inlined_call_operand.hbm [shape: f32[128,128], index: 5, kind: input, shape index: {}]
  %s6 = inlined_call_operand.vmem [shape: f32[1,128], index: 6, kind: input, shape index: {}]
  %s7 = inlined_call_operand.vmem [shape: f32[1,128], index: 7, kind: input, shape index: {}]
  %s8 = inlined_call_operand.vmem [shape: f32[1,128], index: 8, kind: input, shape index: {}]
  %s9 = inlined_call_operand.hbm [shape: f32[128,128], index: 9, kind: input, shape index: {}]
  %s10 = inlined_call_operand.vmem [shape: f32[1,128], index: 10, kind: input, shape index: {}]
  %s11 = inlined_call_operand.vmem [shape: f32[1,128], index: 11, kind: input, shape index: {}]
  %s12 = inlined_call_operand.vmem [shape: f32[8,128], index: 12, kind: input, shape index: {}]
  %s13 = inlined_call_operand.hbm [shape: f32[8,128], index: 13, kind: output, shape index: {}]
  %s14 = sld [smem:[#allocation0]]
  $region74: #{_actor_forward.1} parent=0
    _
  %s16 = ssub.s32 1, %s14
  %s17 = scalar_select 0, %s16, %s14
  $region1: #{_actor_forward.1} parent=0
    #allocation2 [shape = 'u8[65536]{0}', space=vmem, size = 0x10000, scoped, tag = 'input window, operand 1, single buffered']
    #allocation3 [shape = 's32[1]{0}', space=sflag, size = 0x4, scoped, tag = 'scoped memory for _actor_forward.1']
    #allocation4 [shape = 's32[1]{0}', space=sflag, size = 0x4, scoped, tag = 'scoped memory for _actor_forward.1']
    #allocation5 [shape = 'u8[65536]{0}', space=vmem, size = 0x10000, scoped, tag = 'input window, operand 5, single buffered']
    #allocation6 [shape = 's32[1]{0}', space=sflag, size = 0x4, scoped, tag = 'scoped memory for _actor_forward.1']
    #allocation7 [shape = 'u8[65536]{0}', space=vmem, size = 0x10000, scoped, tag = 'input window, operand 9, single buffered']
    #allocation8 [shape = 'u8[4096]{0}', space=vmem, size = 0x1000, scoped, tag = 'output window, operand 0, single buffered']
    %18 = vsyncpa [#allocation3], 0
    %19 = vsyncpa [#allocation6], 0
    %20 = vsyncpa [#allocation4], 0
    // Predicated region
    $region2: #{_actor_forward.1} parent=1 // pred_check
      _
    $region3: #{_actor_forward.1} parent=1 // pred_check_branch
      %22 = sbr.rel (0) target = $region5
    $region4: #{_actor_forward.1} parent=1 // pred_region
      _
    $region5: #{_actor_forward.1} parent=1 // pred_fallthru
      _
    // Predicated region
    $region6: #{_actor_forward.1} parent=1 // pred_check
      _
    $region7: #{_actor_forward.1} parent=1 // pred_check_branch
      %24 = sbr.rel (0) target = $region9
    $region8: #{_actor_forward.1} parent=1 // pred_region
      %s26 = ssub.s32 2048, 2048
      %27 = vsyncadd [#allocation3], %s26
      %s28 = sshll.u32 [#allocation2], 4
      %s29 = int_to_ptr.vmem [resolvable:$true] %s28
      %34 = dma.hbm_to_vmem [thread:$0]  %s1, 2048, %s29, [#allocation3], 128, 128, 8
    $region9: #{_actor_forward.1} parent=1 // pred_fallthru
      _
    // Predicated region
    $region10: #{_actor_forward.1} parent=1 // pred_check
      _
    $region11: #{_actor_forward.1} parent=1 // pred_check_branch
      %36 = sbr.rel (0) target = $region13
    $region12: #{_actor_forward.1} parent=1 // pred_region
      _
    $region13: #{_actor_forward.1} parent=1 // pred_fallthru
      _
    // Predicated region
    $region14: #{_actor_forward.1} parent=1 // pred_check
      _
    $region15: #{_actor_forward.1} parent=1 // pred_check_branch
      %38 = sbr.rel (0) target = $region17
    $region16: #{_actor_forward.1} parent=1 // pred_region
      _
    $region17: #{_actor_forward.1} parent=1 // pred_fallthru
      _
    // Predicated region
    $region18: #{_actor_forward.1} parent=1 // pred_check
      _
    $region19: #{_actor_forward.1} parent=1 // pred_check_branch
      %40 = sbr.rel (0) target = $region21
    $region20: #{_actor_forward.1} parent=1 // pred_region
      _
    $region21: #{_actor_forward.1} parent=1 // pred_fallthru
      _
    // Predicated region
    $region22: #{_actor_forward.1} parent=1 // pred_check
      _
    $region23: #{_actor_forward.1} parent=1 // pred_check_branch
      %42 = sbr.rel (0) target = $region25
    $region24: #{_actor_forward.1} parent=1 // pred_region
      %s44 = ssub.s32 2048, 2048
      %45 = vsyncadd [#allocation6], %s44
      %s46 = sshll.u32 [#allocation5], 4
      %s47 = int_to_ptr.vmem [resolvable:$true] %s46
      %52 = dma.hbm_to_vmem [thread:$0]  %s5, 2048, %s47, [#allocation6], 128, 128, 8
    $region25: #{_actor_forward.1} parent=1 // pred_fallthru
      _
    // Predicated region
    $region26: #{_actor_forward.1} parent=1 // pred_check
      _
    $region27: #{_actor_forward.1} parent=1 // pred_check_branch
      %54 = sbr.rel (0) target = $region29
    $region28: #{_actor_forward.1} parent=1 // pred_region
      _
    $region29: #{_actor_forward.1} parent=1 // pred_fallthru
      _
    // Predicated region
    $region30: #{_actor_forward.1} parent=1 // pred_check
      _
    $region31: #{_actor_forward.1} parent=1 // pred_check_branch
      %56 = sbr.rel (0) target = $region33
    $region32: #{_actor_forward.1} parent=1 // pred_region
      _
    $region33: #{_actor_forward.1} parent=1 // pred_fallthru
      _
    // Predicated region
    $region34: #{_actor_forward.1} parent=1 // pred_check
      _
    $region35: #{_actor_forward.1} parent=1 // pred_check_branch
      %58 = sbr.rel (0) target = $region37
    $region36: #{_actor_forward.1} parent=1 // pred_region
      _
    $region37: #{_actor_forward.1} parent=1 // pred_fallthru
      _
    // Predicated region
    $region38: #{_actor_forward.1} parent=1 // pred_check
      _
    $region39: #{_actor_forward.1} parent=1 // pred_check_branch
      %60 = sbr.rel (0) target = $region41
    $region40: #{_actor_forward.1} parent=1 // pred_region
      %s62 = ssub.s32 2048, 2048
      %63 = vsyncadd [#allocation6], %s62
      %s64 = sshll.u32 [#allocation7], 4
      %s65 = int_to_ptr.vmem [resolvable:$true] %s64
      %70 = dma.hbm_to_vmem [thread:$0]  %s9, 2048, %s65, [#allocation6], 128, 128, 8
    $region41: #{_actor_forward.1} parent=1 // pred_fallthru
      _
    // Predicated region
    $region42: #{_actor_forward.1} parent=1 // pred_check
      _
    $region43: #{_actor_forward.1} parent=1 // pred_check_branch
      %72 = sbr.rel (0) target = $region45
    $region44: #{_actor_forward.1} parent=1 // pred_region
      _
    $region45: #{_actor_forward.1} parent=1 // pred_fallthru
      _
    // Predicated region
    $region46: #{_actor_forward.1} parent=1 // pred_check
      _
    $region47: #{_actor_forward.1} parent=1 // pred_check_branch
      %74 = sbr.rel (0) target = $region49
    $region48: #{_actor_forward.1} parent=1 // pred_region
      _
    $region49: #{_actor_forward.1} parent=1 // pred_fallthru
      _
    // Predicated region
    $region50: #{_actor_forward.1} parent=1 // pred_check
      _
    $region51: #{_actor_forward.1} parent=1 // pred_check_branch
      %76 = sbr.rel (0) target = $region53
    $region52: #{_actor_forward.1} parent=1 // pred_region
      _
    $region53: #{_actor_forward.1} parent=1 // pred_fallthru
      _
    // Predicated region
    $region54: #{_actor_forward.1} parent=1 // pred_check
      _
    $region55: #{_actor_forward.1} parent=1 // pred_check_branch
      %78 = sbr.rel (0) target = $region57
    $region56: #{_actor_forward.1} parent=1 // pred_region
      %79 = dma.done [#allocation3], 2048
    $region57: #{_actor_forward.1} parent=1 // pred_fallthru
      _
    // Predicated region
    $region58: #{_actor_forward.1} parent=1 // pred_check
      _
    $region59: #{_actor_forward.1} parent=1 // pred_check_branch
      %81 = sbr.rel (0) target = $region61
    $region60: #{_actor_forward.1} parent=1 // pred_region
      %82 = dma.done [#allocation6], 2048
    $region61: #{_actor_forward.1} parent=1 // pred_fallthru
      _
    // Predicated region
    $region62: #{_actor_forward.1} parent=1 // pred_check
      _
    $region63: #{_actor_forward.1} parent=1 // pred_check_branch
      %84 = sbr.rel (0) target = $region65
    $region64: #{_actor_forward.1} parent=1 // pred_region
      %85 = dma.done [#allocation6], 2048
    $region65: #{_actor_forward.1} parent=1 // pred_fallthru
      _
    %v86 = vld [vmem:[%s0] sm:$0xff]
    %v87 = vld [vmem:[#allocation2] sm:$0xff]
    %v88 = vld [vmem:[#allocation2 + $0x8] sm:$0xff]
    %v89 = vld [vmem:[#allocation2 + $0x10] sm:$0xff]
    %v90 = vld [vmem:[#allocation2 + $0x18] sm:$0xff]
    %v91 = vld [vmem:[#allocation2 + $0x20] sm:$0xff]
    %v92 = vld [vmem:[#allocation2 + $0x28] sm:$0xff]
    %v93 = vld [vmem:[#allocation2 + $0x30] sm:$0xff]
    %v94 = vld [vmem:[#allocation2 + $0x38] sm:$0xff]
    %v95 = vld [vmem:[#allocation2 + $0x40] sm:$0xff]
    %v96 = vld [vmem:[#allocation2 + $0x48] sm:$0xff]
    %v97 = vld [vmem:[#allocation2 + $0x50] sm:$0xff]
    %v98 = vld [vmem:[#allocation2 + $0x58] sm:$0xff]
    %v99 = vld [vmem:[#allocation2 + $0x60] sm:$0xff]
    %v100 = vld [vmem:[#allocation2 + $0x68] sm:$0xff]
    %v101 = vld [vmem:[#allocation2 + $0x70] sm:$0xff]
    %v102 = vld [vmem:[#allocation2 + $0x78] sm:$0xff]
    %v103 = vld [vmem:[%s2] sm:$0x1]
    %v104 = vld [vmem:[%s3] sm:$0x1]
    %v105 = vld [vmem:[%s4] sm:$0x1]
    %v107 = vlaneseq
    %v108 = vshrl.u32 %v107, 7
    %v109 = vsub.s32 0, %v108
    %v110 = vrot.slane %v103, %v109
    %112 = vmatprep.subr.mxu0 0.0
    %113 = vmatpush1.msra.mxu0 %v87
    %114 = vmatprep.subr.mxu0 0.0
    %115 = vmatpush1.msra.mxu0 %v88
    %116 = vmatprep.subr.mxu0 0.0
    %117 = vmatpush1.msra.mxu0 %v89
    %118 = vmatprep.subr.mxu0 0.0
    %119 = vmatpush1.msra.mxu0 %v90
    %120 = vmatprep.subr.mxu0 0.0
    %121 = vmatpush1.msra.mxu0 %v91
    %122 = vmatprep.subr.mxu0 0.0
    %123 = vmatpush1.msra.mxu0 %v92
    %124 = vmatprep.subr.mxu0 0.0
    %125 = vmatpush1.msra.mxu0 %v93
    %126 = vmatprep.subr.mxu0 0.0
    %127 = vmatpush1.msra.mxu0 %v94
    %128 = vmatprep.subr.mxu0 0.0
    %129 = vmatpush1.msra.mxu0 %v95
    %130 = vmatprep.subr.mxu0 0.0
    %131 = vmatpush1.msra.mxu0 %v96
    %132 = vmatprep.subr.mxu0 0.0
    %133 = vmatpush1.msra.mxu0 %v97
    %134 = vmatprep.subr.mxu0 0.0
    %135 = vmatpush1.msra.mxu0 %v98
    %136 = vmatprep.subr.mxu0 0.0
    %137 = vmatpush1.msra.mxu0 %v99
    %138 = vmatprep.subr.mxu0 0.0
    %139 = vmatpush1.msra.mxu0 %v100
    %140 = vmatprep.subr.mxu0 0.0
    %141 = vmatpush1.msra.mxu0 %v101
    %142 = vmatprep.subr.mxu0 0.0
    %143 = vmatpush1.msra.mxu0 %v102
    %144 = vmatprep.subr.mxu0 0.0
    %145 = vmatpush1.msra.mxu0 0.0
    %146 = vmatprep.subr.mxu0 0.0
    %147 = vmatpush1.msra.mxu0 0.0
    %148 = vmatprep.subr.mxu0 0.0
    %149 = vmatpush1.msra.mxu0 0.0
    %150 = vmatprep.subr.mxu0 0.0
    %151 = vmatpush1.msra.mxu0 0.0
    %152 = vmatprep.subr.mxu0 0.0
    %153 = vmatpush1.msra.mxu0 0.0
    %154 = vmatprep.subr.mxu0 0.0
    %155 = vmatpush1.msra.mxu0 0.0
    %156 = vmatprep.subr.mxu0 0.0
    %157 = vmatpush1.msra.mxu0 0.0
    %158 = vmatprep.subr.mxu0 0.0
    %159 = vmatpush1.msra.mxu0 0.0
    %160 = vmatprep.subr.mxu0 0.0
    %161 = vmatpush1.msra.mxu0 0.0
    %162 = vmatprep.subr.mxu0 0.0
    %163 = vmatpush1.msra.mxu0 0.0
    %164 = vmatprep.subr.mxu0 0.0
    %165 = vmatpush1.msra.mxu0 0.0
    %166 = vmatprep.subr.mxu0 0.0
    %167 = vmatpush1.msra.mxu0 0.0
    %168 = vmatprep.subr.mxu0 0.0
    %169 = vmatpush1.msra.mxu0 0.0
    %170 = vmatprep.subr.mxu0 0.0
    %171 = vmatpush1.msra.mxu0 0.0
    %172 = vmatprep.subr.mxu0 0.0
    %173 = vmatpush1.msra.mxu0 0.0
    %174 = vmatprep.subr.mxu0 0.0
    %175 = vmatpush1.msra.mxu0 0.0
    %176 = vmatprep.mubr.f32.mxu0 0.0
    %177 = vmatmul.mubr.f32.gmra.mrb[0].mxu0 %v86
    %v178 = vpop.f32.mrb[0].mxu0
    %v179 = vadd.f32 %v110, %v178
    %v180 = vpop.f32.mrb[0].mxu0
    %181 = vdwg.mxu0
    %vm182 = vcmp.gt.f32.partialorder %v179, 0.0
    %v183 = vmin.f32 %v179, 0.0
    %v184 = vmul.f32 %v183, 1.442695
    %v185 = vpow.pop %v184
    %v186 = vsub.f32 %v185, 1.0
    %v187 = vsel %vm182, %v179, %v186
    %188 = vadd.xlane.f32.xlu0 %v187
    %v189 = vpop.xlane.xlu0 %188
    %v190 = vmul.f32 %v189, 0.015625
    %v191 = vmul.f32 %v187, %v187
    %192 = vadd.xlane.f32.xlu0 %v191
    %v193 = vpop.xlane.xlu0 %192
    %v194 = vmul.f32 %v193, 0.015625
    %v195 = vmul.f32 %v190, %v190
    %v196 = vsub.f32 %v194, %v195
    %v197 = vsub.f32 %v187, %v190
    %v198 = vadd.f32 %v196, 1e-05
    %v199 = vrsqrt.pop %v198
    %v200 = vmul.f32 %v197, %v199
    %v202 = vlaneseq
    %v203 = vshrl.u32 %v202, 7
    %v204 = vsub.s32 0, %v203
    %v205 = vrot.slane %v104, %v204
    %v207 = vmul.f32 %v200, %v205
    %v209 = vlaneseq
    %v210 = vshrl.u32 %v209, 7
    %v211 = vsub.s32 0, %v210
    %v212 = vrot.slane %v105, %v211
    %v214 = vadd.f32 %v207, %v212
    %v215 = vld [vmem:[#allocation5] sm:$0xff]
    %v216 = vld [vmem:[#allocation5 + $0x8] sm:$0xff]
    %v217 = vld [vmem:[#allocation5 + $0x10] sm:$0xff]
    %v218 = vld [vmem:[#allocation5 + $0x18] sm:$0xff]
    %v219 = vld [vmem:[#allocation5 + $0x20] sm:$0xff]
    %v220 = vld [vmem:[#allocation5 + $0x28] sm:$0xff]
    %v221 = vld [vmem:[#allocation5 + $0x30] sm:$0xff]
    %v222 = vld [vmem:[#allocation5 + $0x38] sm:$0xff]
    %v223 = vld [vmem:[#allocation5 + $0x40] sm:$0xff]
    %v224 = vld [vmem:[#allocation5 + $0x48] sm:$0xff]
    %v225 = vld [vmem:[#allocation5 + $0x50] sm:$0xff]
    %v226 = vld [vmem:[#allocation5 + $0x58] sm:$0xff]
    %v227 = vld [vmem:[#allocation5 + $0x60] sm:$0xff]
    %v228 = vld [vmem:[#allocation5 + $0x68] sm:$0xff]
    %v229 = vld [vmem:[#allocation5 + $0x70] sm:$0xff]
    %v230 = vld [vmem:[#allocation5 + $0x78] sm:$0xff]
    %v231 = vld [vmem:[%s6] sm:$0x1]
    %v232 = vld [vmem:[%s7] sm:$0x1]
    %v233 = vld [vmem:[%s8] sm:$0x1]
    %v235 = vlaneseq
    %v236 = vshrl.u32 %v235, 7
    %v237 = vsub.s32 0, %v236
    %v238 = vrot.slane %v231, %v237
    %240 = vmatprep.subr.mxu0 0.0
    %241 = vmatpush1.msra.mxu0 %v215
    %242 = vmatprep.subr.mxu0 0.0
    %243 = vmatpush1.msra.mxu0 %v216
    %244 = vmatprep.subr.mxu0 0.0
    %245 = vmatpush1.msra.mxu0 %v217
    %246 = vmatprep.subr.mxu0 0.0
    %247 = vmatpush1.msra.mxu0 %v218
    %248 = vmatprep.subr.mxu0 0.0
    %249 = vmatpush1.msra.mxu0 %v219
    %250 = vmatprep.subr.mxu0 0.0
    %251 = vmatpush1.msra.mxu0 %v220
    %252 = vmatprep.subr.mxu0 0.0
    %253 = vmatpush1.msra.mxu0 %v221
    %254 = vmatprep.subr.mxu0 0.0
    %255 = vmatpush1.msra.mxu0 %v222
    %256 = vmatprep.subr.mxu0 0.0
    %257 = vmatpush1.msra.mxu0 %v223
    %258 = vmatprep.subr.mxu0 0.0
    %259 = vmatpush1.msra.mxu0 %v224
    %260 = vmatprep.subr.mxu0 0.0
    %261 = vmatpush1.msra.mxu0 %v225
    %262 = vmatprep.subr.mxu0 0.0
    %263 = vmatpush1.msra.mxu0 %v226
    %264 = vmatprep.subr.mxu0 0.0
    %265 = vmatpush1.msra.mxu0 %v227
    %266 = vmatprep.subr.mxu0 0.0
    %267 = vmatpush1.msra.mxu0 %v228
    %268 = vmatprep.subr.mxu0 0.0
    %269 = vmatpush1.msra.mxu0 %v229
    %270 = vmatprep.subr.mxu0 0.0
    %271 = vmatpush1.msra.mxu0 %v230
    %272 = vmatprep.subr.mxu0 0.0
    %273 = vmatpush1.msra.mxu0 0.0
    %274 = vmatprep.subr.mxu0 0.0
    %275 = vmatpush1.msra.mxu0 0.0
    %276 = vmatprep.subr.mxu0 0.0
    %277 = vmatpush1.msra.mxu0 0.0
    %278 = vmatprep.subr.mxu0 0.0
    %279 = vmatpush1.msra.mxu0 0.0
    %280 = vmatprep.subr.mxu0 0.0
    %281 = vmatpush1.msra.mxu0 0.0
    %282 = vmatprep.subr.mxu0 0.0
    %283 = vmatpush1.msra.mxu0 0.0
    %284 = vmatprep.subr.mxu0 0.0
    %285 = vmatpush1.msra.mxu0 0.0
    %286 = vmatprep.subr.mxu0 0.0
    %287 = vmatpush1.msra.mxu0 0.0
    %288 = vmatprep.subr.mxu0 0.0
    %289 = vmatpush1.msra.mxu0 0.0
    %290 = vmatprep.subr.mxu0 0.0
    %291 = vmatpush1.msra.mxu0 0.0
    %292 = vmatprep.subr.mxu0 0.0
    %293 = vmatpush1.msra.mxu0 0.0
    %294 = vmatprep.subr.mxu0 0.0
    %295 = vmatpush1.msra.mxu0 0.0
    %296 = vmatprep.subr.mxu0 0.0
    %297 = vmatpush1.msra.mxu0 0.0
    %298 = vmatprep.subr.mxu0 0.0
    %299 = vmatpush1.msra.mxu0 0.0
    %300 = vmatprep.subr.mxu0 0.0
    %301 = vmatpush1.msra.mxu0 0.0
    %302 = vmatprep.subr.mxu0 0.0
    %303 = vmatpush1.msra.mxu0 0.0
    %304 = vmatprep.mubr.f32.mxu0 0.0
    %305 = vmatmul.mubr.f32.gmra.mrb[0].mxu0 %v214
    %v306 = vpop.f32.mrb[0].mxu0
    %v307 = vadd.f32 %v238, %v306
    %v308 = vpop.f32.mrb[0].mxu0
    %309 = vdwg.mxu0
    %vm310 = vcmp.gt.f32.partialorder %v307, 0.0
    %v311 = vmin.f32 %v307, 0.0
    %v312 = vmul.f32 %v311, 1.442695
    %v313 = vpow.pop %v312
    %v314 = vsub.f32 %v313, 1.0
    %v315 = vsel %vm310, %v307, %v314
    %316 = vadd.xlane.f32.xlu0 %v315
    %v317 = vpop.xlane.xlu0 %316
    %v318 = vmul.f32 %v317, 0.015625
    %v319 = vmul.f32 %v315, %v315
    %320 = vadd.xlane.f32.xlu0 %v319
    %v321 = vpop.xlane.xlu0 %320
    %v322 = vmul.f32 %v321, 0.015625
    %v323 = vmul.f32 %v318, %v318
    %v324 = vsub.f32 %v322, %v323
    %v325 = vsub.f32 %v315, %v318
    %v326 = vadd.f32 %v324, 1e-05
    %v327 = vrsqrt.pop %v326
    %v328 = vmul.f32 %v325, %v327
    %v330 = vlaneseq
    %v331 = vshrl.u32 %v330, 7
    %v332 = vsub.s32 0, %v331
    %v333 = vrot.slane %v232, %v332
    %v335 = vmul.f32 %v328, %v333
    %v337 = vlaneseq
    %v338 = vshrl.u32 %v337, 7
    %v339 = vsub.s32 0, %v338
    %v340 = vrot.slane %v233, %v339
    %v342 = vadd.f32 %v335, %v340
    %v343 = vld [vmem:[#allocation7] sm:$0xff]
    %v344 = vld [vmem:[#allocation7 + $0x8] sm:$0xff]
    %v345 = vld [vmem:[#allocation7 + $0x10] sm:$0xff]
    %v346 = vld [vmem:[#allocation7 + $0x18] sm:$0xff]
    %v347 = vld [vmem:[#allocation7 + $0x20] sm:$0xff]
    %v348 = vld [vmem:[#allocation7 + $0x28] sm:$0xff]
    %v349 = vld [vmem:[#allocation7 + $0x30] sm:$0xff]
    %v350 = vld [vmem:[#allocation7 + $0x38] sm:$0xff]
    %v351 = vld [vmem:[#allocation7 + $0x40] sm:$0xff]
    %v352 = vld [vmem:[#allocation7 + $0x48] sm:$0xff]
    %v353 = vld [vmem:[#allocation7 + $0x50] sm:$0xff]
    %v354 = vld [vmem:[#allocation7 + $0x58] sm:$0xff]
    %v355 = vld [vmem:[#allocation7 + $0x60] sm:$0xff]
    %v356 = vld [vmem:[#allocation7 + $0x68] sm:$0xff]
    %v357 = vld [vmem:[#allocation7 + $0x70] sm:$0xff]
    %v358 = vld [vmem:[#allocation7 + $0x78] sm:$0xff]
    %v359 = vld [vmem:[%s10] sm:$0x1]
    %v361 = vlaneseq
    %v362 = vshrl.u32 %v361, 7
    %v363 = vsub.s32 0, %v362
    %v364 = vrot.slane %v359, %v363
    %366 = vmatprep.subr.mxu0 0.0
    %367 = vmatpush1.msra.mxu0 %v343
    %368 = vmatprep.subr.mxu0 0.0
    %369 = vmatpush1.msra.mxu0 %v344
    %370 = vmatprep.subr.mxu0 0.0
    %371 = vmatpush1.msra.mxu0 %v345
    %372 = vmatprep.subr.mxu0 0.0
    %373 = vmatpush1.msra.mxu0 %v346
    %374 = vmatprep.subr.mxu0 0.0
    %375 = vmatpush1.msra.mxu0 %v347
    %376 = vmatprep.subr.mxu0 0.0
    %377 = vmatpush1.msra.mxu0 %v348
    %378 = vmatprep.subr.mxu0 0.0
    %379 = vmatpush1.msra.mxu0 %v349
    %380 = vmatprep.subr.mxu0 0.0
    %381 = vmatpush1.msra.mxu0 %v350
    %382 = vmatprep.subr.mxu0 0.0
    %383 = vmatpush1.msra.mxu0 %v351
    %384 = vmatprep.subr.mxu0 0.0
    %385 = vmatpush1.msra.mxu0 %v352
    %386 = vmatprep.subr.mxu0 0.0
    %387 = vmatpush1.msra.mxu0 %v353
    %388 = vmatprep.subr.mxu0 0.0
    %389 = vmatpush1.msra.mxu0 %v354
    %390 = vmatprep.subr.mxu0 0.0
    %391 = vmatpush1.msra.mxu0 %v355
    %392 = vmatprep.subr.mxu0 0.0
    %393 = vmatpush1.msra.mxu0 %v356
    %394 = vmatprep.subr.mxu0 0.0
    %395 = vmatpush1.msra.mxu0 %v357
    %396 = vmatprep.subr.mxu0 0.0
    %397 = vmatpush1.msra.mxu0 %v358
    %398 = vmatprep.subr.mxu0 0.0
    %399 = vmatpush1.msra.mxu0 0.0
    %400 = vmatprep.subr.mxu0 0.0
    %401 = vmatpush1.msra.mxu0 0.0
    %402 = vmatprep.subr.mxu0 0.0
    %403 = vmatpush1.msra.mxu0 0.0
    %404 = vmatprep.subr.mxu0 0.0
    %405 = vmatpush1.msra.mxu0 0.0
    %406 = vmatprep.subr.mxu0 0.0
    %407 = vmatpush1.msra.mxu0 0.0
    %408 = vmatprep.subr.mxu0 0.0
    %409 = vmatpush1.msra.mxu0 0.0
    %410 = vmatprep.subr.mxu0 0.0
    %411 = vmatpush1.msra.mxu0 0.0
    %412 = vmatprep.subr.mxu0 0.0
    %413 = vmatpush1.msra.mxu0 0.0
    %414 = vmatprep.subr.mxu0 0.0
    %415 = vmatpush1.msra.mxu0 0.0
    %416 = vmatprep.subr.mxu0 0.0
    %417 = vmatpush1.msra.mxu0 0.0
    %418 = vmatprep.subr.mxu0 0.0
    %419 = vmatpush1.msra.mxu0 0.0
    %420 = vmatprep.subr.mxu0 0.0
    %421 = vmatpush1.msra.mxu0 0.0
    %422 = vmatprep.subr.mxu0 0.0
    %423 = vmatpush1.msra.mxu0 0.0
    %424 = vmatprep.subr.mxu0 0.0
    %425 = vmatpush1.msra.mxu0 0.0
    %426 = vmatprep.subr.mxu0 0.0
    %427 = vmatpush1.msra.mxu0 0.0
    %428 = vmatprep.subr.mxu0 0.0
    %429 = vmatpush1.msra.mxu0 0.0
    %430 = vmatprep.mubr.f32.mxu0 0.0
    %431 = vmatmul.mubr.f32.gmra.mrb[0].mxu0 %v342
    %v432 = vpop.f32.mrb[0].mxu0
    %v433 = vadd.f32 %v364, %v432
    %v434 = vpop.f32.mrb[0].mxu0
    %435 = vdwg.mxu0
    %v436 = vld [vmem:[%s11] sm:$0x1]
    %v437 = vld [vmem:[%s12] sm:$0xff]
    %v439 = vlaneseq
    %v440 = vshrl.u32 %v439, 7
    %v441 = vsub.s32 0, %v440
    %v442 = vrot.slane %v436, %v441
    %v444 = vmul.f32 %v442, %v437
    %v445 = vadd.f32 %v433, %v444
    %446 = vst [vmem:[#allocation8] sm:$0xff] %v445
    // Predicated region
    $region66: #{_actor_forward.1} parent=1 // pred_check
      _
    $region67: #{_actor_forward.1} parent=1 // pred_check_branch
      %448 = sbr.rel (0) target = $region69
    $region68: #{_actor_forward.1} parent=1 // pred_region
      %s450 = ssub.s32 128, 128
      %451 = vsyncadd [#allocation4], %s450
      %s453 = sshll.u32 [#allocation8], 4
      %s454 = int_to_ptr.vmem [resolvable:$true] %s453
      %456 = dma.vmem_to_hbm [thread:$0]  %s454, 128, %s13, [#allocation4]
    $region69: #{_actor_forward.1} parent=1 // pred_fallthru
      _
    // Predicated region
    $region70: #{_actor_forward.1} parent=1 // pred_check
      _
    $region71: #{_actor_forward.1} parent=1 // pred_check_branch
      %458 = sbr.rel (0) target = $region73
    $region72: #{_actor_forward.1} parent=1 // pred_region
      %459 = dma.done [#allocation4], 128
    $region73: #{_actor_forward.1} parent=1 // pred_fallthru
      _
    %460 = vsyncpa [#allocation3], 1
    %461 = vsyncpa [#allocation6], 1
    %462 = vsyncpa [#allocation4], 1

</llo_original>
